<compile_context>
chip_gen: v6e
topology: v6e:2x2x1
jax: 0.10.0
libtpu: 0.0.40
codegen_flags: <defaults>
</compile_context>

<pallas_src>
import functools

import jax
import jax.numpy as jnp
from jax import lax
from jax.experimental import pallas as pl
from jax.experimental.pallas import tpu as pltpu

BN_EPS = 1e-5
DROPOUT_P = 0.5

_LANE = 128
_SUBLANE = 8
_MAX_BATCH_TILE = 512
_VMEM_LIMIT = 48 * 1024 * 1024  # headroom vs v7x 64 MiB / raises v5e/v6e default


def _round_up(n, m):
    return ((n + m - 1) // m) * m


# ---------------- pass 1: global BatchNorm statistics ----------------
def _stats_kernel(x_ref, w1_ref, b1_ref, sum_ref, sq_ref, *,
                  tile_b, n_valid, n_padded):
    i = pl.program_id(0)

    @pl.when(i == 0)
    def _():
        sum_ref[...] = jnp.zeros_like(sum_ref)
        sq_ref[...] = jnp.zeros_like(sq_ref)

    # bf16 operands, f32 accumulation on the MXU
    h = jnp.dot(x_ref[...], w1_ref[...],
                preferred_element_type=jnp.float32) + b1_ref[...]

    if n_padded != n_valid:  # static: mask zero-padded batch rows out of stats
        row = i * tile_b + lax.broadcasted_iota(jnp.int32, h.shape, 0)
        h = jnp.where(row < n_valid, h, 0.0)

    sum_ref[...] += jnp.sum(h, axis=0, keepdims=True)
    sq_ref[...] += jnp.sum(h * h, axis=0, keepdims=True)


# -------- pass 2: Linear1 + BN(normalize) + ReLU + Dropout + Linear2 --------
def _proj_kernel(x_ref, w1_ref, b1_ref, mean_ref, rstd_ref, gamma_ref, beta_ref,
                 drop_ref, w2_ref, b2_ref, out_ref):
    h = jnp.dot(x_ref[...], w1_ref[...],
                preferred_element_type=jnp.float32) + b1_ref[...]
    # BatchNorm1d (training mode) with global batch statistics, f32 math
    h = (h - mean_ref[...]) * rstd_ref[...]
    h = h * gamma_ref[...] + beta_ref[...]
    # ReLU
    h = jnp.maximum(h, 0.0)
    # Dropout: precomputed inverted-dropout scale mask {0, 1/(1-p)}
    h = h * drop_ref[...].astype(jnp.float32)
    # Linear 2 (bf16 operands, f32 accumulation)
    y = jnp.dot(h.astype(jnp.bfloat16), w2_ref[...],
                preferred_element_type=jnp.float32) + b2_ref[...]
    out_ref[...] = y.astype(out_ref.dtype)


@jax.jit
def projection_mlp(x, w1, b1, gamma, beta, w2, b2, dropout_key):
    B, in_dim = x.shape
    hidden_dim = w1.shape[1]
    out_dim = w2.shape[1]

    dp = _round_up(in_dim, _LANE)
    hp = _round_up(hidden_dim, _LANE)
    op = _round_up(out_dim, _LANE)
    tile_b = min(_MAX_BATCH_TILE, _round_up(B, _SUBLANE))
    bp = _round_up(B, tile_b)
    n_tiles = bp // tile_b

    f32, bf16 = jnp.float32, jnp.bfloat16

    def pad2(a, rows, cols):
        return jnp.pad(a, ((0, rows - a.shape[0]), (0, cols - a.shape[1])))

    # Lane-dense padding; matmul operands in bf16 (halves weight/x HBM traffic).
    xp = pad2(x.astype(f32), bp, dp).astype(bf16)
    w1p = pad2(w1.astype(f32), dp, hp).astype(bf16)
    w2p = pad2(w2.astype(f32), hp, op).astype(bf16)
    b1p = pad2(jnp.reshape(b1, (1, -1)).astype(f32), 1, hp)
    gp = pad2(jnp.reshape(gamma, (1, -1)).astype(f32), 1, hp)
    bp_ = pad2(jnp.reshape(beta, (1, -1)).astype(f32), 1, hp)
    b2p = pad2(jnp.reshape(b2, (1, -1)).astype(f32), 1, op)

    # Inverted-dropout scale mask, generated once in the wrapper (portable).
    keep_prob = 1.0 - DROPOUT_P
    keep = jax.random.bernoulli(dropout_key, keep_prob, (bp, hp))
    drop = jnp.where(keep, 1.0 / keep_prob, 0.0).astype(bf16)

    def row_spec(shape):
        return pl.BlockSpec(shape, lambda i: (i, 0))

    def full_spec(shape):
        return pl.BlockSpec(shape, lambda i: (0, 0))

    # ---- pass 1: accumulate sum(h), sum(h^2) over batch tiles ----
    stats_kernel = functools.partial(
        _stats_kernel, tile_b=tile_b, n_valid=B, n_padded=bp)
    hsum, hsq = pl.pallas_call(
        stats_kernel,
        grid=(n_tiles,),
        in_specs=[row_spec((tile_b, dp)),
                  full_spec((dp, hp)),
                  full_spec((1, hp))],
        out_specs=[full_spec((1, hp)), full_spec((1, hp))],
        out_shape=[jax.ShapeDtypeStruct((1, hp), f32),
                   jax.ShapeDtypeStruct((1, hp), f32)],
        compiler_params=pltpu.CompilerParams(
            dimension_semantics=("arbitrary",),      # reduction/accumulator axis
            vmem_limit_bytes=_VMEM_LIMIT),
    )(xp, w1p, b1p)

    # Finalize statistics (tiny (1, H) XLA ops): biased variance, eps=1e-5.
    mean = hsum / B
    var = jnp.maximum(hsq / B - mean * mean, 0.0)
    rstd = lax.rsqrt(var + BN_EPS)

    # ---- pass 2: normalize + ReLU + dropout + second Linear ----
    yp = pl.pallas_call(
        _proj_kernel,
        grid=(n_tiles,),
        in_specs=[row_spec((tile_b, dp)),
                  full_spec((dp, hp)),
                  full_spec((1, hp)),
                  full_spec((1, hp)),
                  full_spec((1, hp)),
                  full_spec((1, hp)),
                  full_spec((1, hp)),
                  row_spec((tile_b, hp)),
                  full_spec((hp, op)),
                  full_spec((1, op))],
        out_specs=row_spec((tile_b, op)),
        out_shape=jax.ShapeDtypeStruct((bp, op), f32),
        compiler_params=pltpu.CompilerParams(
            dimension_semantics=("parallel",),       # batch tiles independent
            vmem_limit_bytes=_VMEM_LIMIT),
    )(xp, w1p, b1p, mean, rstd, gp, bp_, drop, w2p, b2p)

    return yp[:B, :out_dim].astype(x.dtype)


def init_params(key, in_dim, hidden_dim, out_dim):
    """Deterministic parameter init matching LinearXavier / BatchNorm1d."""
    k1, k2 = jax.random.split(key)

    def xavier_uniform(k, fan_in, fan_out):
        bound = (6.0 / (fan_in + fan_out)) ** 0.5
        # stored as (in, out); same distribution as torch's (out, in) weight
        return jax.random.uniform(k, (fan_in, fan_out), jnp.float32,
                                  minval=-bound, maxval=bound)

    w1 = xavier_uniform(k1, in_dim, hidden_dim)
    b1 = jnp.full((1, hidden_dim), 0.01, jnp.float32)   # nn.init.constant_(bias, 0.01)
    gamma = jnp.ones((1, hidden_dim), jnp.float32)      # BatchNorm1d weight
    beta = jnp.zeros((1, hidden_dim), jnp.float32)      # BatchNorm1d bias
    w2 = xavier_uniform(k2, hidden_dim, out_dim)
    b2 = jnp.full((1, out_dim), 0.01, jnp.float32)
    return w1, b1, gamma, beta, w2, b2


if __name__ == "__main__":
    B, in_dim, hidden_dim, out_dim = 8, 16, 32, 8

    key = jax.random.PRNGKey(0)
    kx, kp, kd = jax.random.split(key, 3)
    x = jax.random.normal(kx, (B, in_dim), jnp.float32)
    w1, b1, gamma, beta, w2, b2 = init_params(kp, in_dim, hidden_dim, out_dim)

    y = projection_mlp(x, w1, b1, gamma, beta, w2, b2, kd)
    jax.block_until_ready(y)
    assert y.shape == (B, out_dim)
    assert bool(jnp.all(jnp.isfinite(y)))
    print("KERNEL_OK")
</pallas_src>

<mosaic_0001>
module attributes {stable_mosaic.version = 11 : i64} {
  func.func @_stats_kernel(%arg0: i32, %arg1: memref<8x128xbf16, #tpu.memory_space<vmem>>, %arg2: memref<128x128xbf16, #tpu.memory_space<vmem>>, %arg3: memref<1x128xf32, #tpu.memory_space<vmem>>, %arg4: memref<1x128xf32, #tpu.memory_space<vmem>>, %arg5: memref<1x128xf32, #tpu.memory_space<vmem>>) attributes {dimension_semantics = [#tpu.dimension_semantics<arbitrary>], iteration_bounds = array<i64: 1>, scalar_prefetch = 0 : i64, scratch_operands = 0 : i64, tpu.core_type = #tpu.core_type<tc>, window_params = [{transform_indices = @transform_0, window_bounds = array<i64: 8, 128>}, {pipeline_mode = #tpu.pipeline_mode<synchronous>, transform_indices = @transform_1, window_bounds = array<i64: 128, 128>}, {pipeline_mode = #tpu.pipeline_mode<synchronous>, transform_indices = @transform_2, window_bounds = array<i64: 1, 128>}, {pipeline_mode = #tpu.pipeline_mode<synchronous>, transform_indices = @transform_3, window_bounds = array<i64: 1, 128>}, {pipeline_mode = #tpu.pipeline_mode<synchronous>, transform_indices = @transform_4, window_bounds = array<i64: 1, 128>}]} {
    %c0_i32 = arith.constant 0 : i32
    %0 = arith.cmpi eq, %arg0, %c0_i32 : i32
    %1 = arith.extui %0 : i1 to i32
    %c0_i32_0 = arith.constant 0 : i32
    %2 = arith.cmpi ne, %1, %c0_i32_0 : i32
    scf.if %2 {
      %cst_16 = arith.constant 0.000000e+00 : f32
      %20 = vector.broadcast %cst_16 : f32 to vector<1x128xf32>
      %c0_17 = arith.constant 0 : index
      %c0_18 = arith.constant 0 : index
      %21 = vector.load %arg4[%c0_17, %c0_18] : memref<1x128xf32, #tpu.memory_space<vmem>>, vector<1x128xf32>
      tpu.vector_store %arg4[%c0_17, %c0_18], %20 {strides = array<i32>} : memref<1x128xf32, #tpu.memory_space<vmem>>, vector<1x128xf32>,
      %cst_19 = arith.constant 0.000000e+00 : f32
      %22 = vector.broadcast %cst_19 : f32 to vector<1x128xf32>
      %c0_20 = arith.constant 0 : index
      %c0_21 = arith.constant 0 : index
      %23 = vector.load %arg5[%c0_20, %c0_21] : memref<1x128xf32, #tpu.memory_space<vmem>>, vector<1x128xf32>
      tpu.vector_store %arg5[%c0_20, %c0_21], %22 {strides = array<i32>} : memref<1x128xf32, #tpu.memory_space<vmem>>, vector<1x128xf32>,
    } else {
    }
    %c0 = arith.constant 0 : index
    %c0_1 = arith.constant 0 : index
    %3 = vector.load %arg1[%c0, %c0_1] : memref<8x128xbf16, #tpu.memory_space<vmem>>, vector<8x128xbf16>
    %c0_2 = arith.constant 0 : index
    %c0_3 = arith.constant 0 : index
    %4 = vector.load %arg2[%c0_2, %c0_3] : memref<128x128xbf16, #tpu.memory_space<vmem>>, vector<128x128xbf16>
    %cst = arith.constant dense<0.000000e+00> : vector<8x128xf32>
    %5 = tpu.matmul %3, %4, %cst {dimension_numbers = #tpu.dot_dimension_numbers<[1], [0], [0], [1], [0, 0, 1, 1], [], []>} : vector<8x128xbf16>, vector<128x128xbf16>, vector<8x128xf32> -> vector<8x128xf32>
    %c0_4 = arith.constant 0 : index
    %c0_5 = arith.constant 0 : index
    %6 = vector.load %arg3[%c0_4, %c0_5] : memref<1x128xf32, #tpu.memory_space<vmem>>, vector<1x128xf32>
    %7 = vector.broadcast %6 : vector<1x128xf32> to vector<8x128xf32>
    %8 = arith.addf %5, %7 : vector<8x128xf32>
    %c0_6 = arith.constant 0 : index
    %c0_7 = arith.constant 0 : index
    %9 = vector.load %arg4[%c0_6, %c0_7] : memref<1x128xf32, #tpu.memory_space<vmem>>, vector<1x128xf32>
    %cst_8 = arith.constant dense<0.000000e+00> : vector<128xf32>
    %10 = vector.multi_reduction <add>, %8, %cst_8 [0] : vector<8x128xf32> to vector<128xf32>
    %11 = vector.shape_cast %10 : vector<128xf32> to vector<1x128xf32>
    %12 = arith.addf %9, %11 : vector<1x128xf32>
    %c0_9 = arith.constant 0 : index
    %c0_10 = arith.constant 0 : index
    %13 = vector.load %arg4[%c0_9, %c0_10] : memref<1x128xf32, #tpu.memory_space<vmem>>, vector<1x128xf32>
    tpu.vector_store %arg4[%c0_9, %c0_10], %12 {strides = array<i32>} : memref<1x128xf32, #tpu.memory_space<vmem>>, vector<1x128xf32>,
    %c0_11 = arith.constant 0 : index
    %c0_12 = arith.constant 0 : index
    %14 = vector.load %arg5[%c0_11, %c0_12] : memref<1x128xf32, #tpu.memory_space<vmem>>, vector<1x128xf32>
    %15 = arith.mulf %8, %8 : vector<8x128xf32>
    %cst_13 = arith.constant dense<0.000000e+00> : vector<128xf32>
    %16 = vector.multi_reduction <add>, %15, %cst_13 [0] : vector<8x128xf32> to vector<128xf32>
    %17 = vector.shape_cast %16 : vector<128xf32> to vector<1x128xf32>
    %18 = arith.addf %14, %17 : vector<1x128xf32>
    %c0_14 = arith.constant 0 : index
    %c0_15 = arith.constant 0 : index
    %19 = vector.load %arg5[%c0_14, %c0_15] : memref<1x128xf32, #tpu.memory_space<vmem>>, vector<1x128xf32>
    tpu.vector_store %arg5[%c0_14, %c0_15], %18 {strides = array<i32>} : memref<1x128xf32, #tpu.memory_space<vmem>>, vector<1x128xf32>,
    return
  }
  func.func @transform_0(%arg0: i32) -> (i32, i32) {
    %c0_i32 = arith.constant 0 : i32
    %c0_i32_0 = arith.constant 0 : i32
    return %arg0, %c0_i32 : i32, i32
  }
  func.func @transform_1(%arg0: i32) -> (i32, i32) {
    %c0_i32 = arith.constant 0 : i32
    %c0_i32_0 = arith.constant 0 : i32
    %c0_i32_1 = arith.constant 0 : i32
    return %c0_i32, %c0_i32_0 : i32, i32
  }
  func.func @transform_2(%arg0: i32) -> (i32, i32) {
    %c0_i32 = arith.constant 0 : i32
    %c0_i32_0 = arith.constant 0 : i32
    %c0_i32_1 = arith.constant 0 : i32
    return %c0_i32, %c0_i32_0 : i32, i32
  }
  func.func @transform_3(%arg0: i32) -> (i32, i32) {
    %c0_i32 = arith.constant 0 : i32
    %c0_i32_0 = arith.constant 0 : i32
    %c0_i32_1 = arith.constant 0 : i32
    return %c0_i32, %c0_i32_0 : i32, i32
  }
  func.func @transform_4(%arg0: i32) -> (i32, i32) {
    %c0_i32 = arith.constant 0 : i32
    %c0_i32_0 = arith.constant 0 : i32
    %c0_i32_1 = arith.constant 0 : i32
    return %c0_i32, %c0_i32_0 : i32, i32
  }
}

module attributes {stable_mosaic.version = 11 : i64} {
  func.func @_proj_kernel(%arg0: i32, %arg1: memref<8x128xbf16, #tpu.memory_space<vmem>>, %arg2: memref<128x128xbf16, #tpu.memory_space<vmem>>, %arg3: memref<1x128xf32, #tpu.memory_space<vmem>>, %arg4: memref<1x128xf32, #tpu.memory_space<vmem>>, %arg5: memref<1x128xf32, #tpu.memory_space<vmem>>, %arg6: memref<1x128xf32, #tpu.memory_space<vmem>>, %arg7: memref<1x128xf32, #tpu.memory_space<vmem>>, %arg8: memref<8x128xbf16, #tpu.memory_space<vmem>>, %arg9: memref<128x128xbf16, #tpu.memory_space<vmem>>, %arg10: memref<1x128xf32, #tpu.memory_space<vmem>>, %arg11: memref<8x128xf32, #tpu.memory_space<vmem>>) attributes {dimension_semantics = [#tpu.dimension_semantics<parallel>], iteration_bounds = array<i64: 1>, scalar_prefetch = 0 : i64, scratch_operands = 0 : i64, tpu.core_type = #tpu.core_type<tc>, window_params = [{transform_indices = @transform_0, window_bounds = array<i64: 8, 128>}, {pipeline_mode = #tpu.pipeline_mode<synchronous>, transform_indices = @transform_1, window_bounds = array<i64: 128, 128>}, {pipeline_mode = #tpu.pipeline_mode<synchronous>, transform_indices = @transform_2, window_bounds = array<i64: 1, 128>}, {pipeline_mode = #tpu.pipeline_mode<synchronous>, transform_indices = @transform_3, window_bounds = array<i64: 1, 128>}, {pipeline_mode = #tpu.pipeline_mode<synchronous>, transform_indices = @transform_4, window_bounds = array<i64: 1, 128>}, {pipeline_mode = #tpu.pipeline_mode<synchronous>, transform_indices = @transform_5, window_bounds = array<i64: 1, 128>}, {pipeline_mode = #tpu.pipeline_mode<synchronous>, transform_indices = @transform_6, window_bounds = array<i64: 1, 128>}, {transform_indices = @transform_7, window_bounds = array<i64: 8, 128>}, {pipeline_mode = #tpu.pipeline_mode<synchronous>, transform_indices = @transform_8, window_bounds = array<i64: 128, 128>}, {pipeline_mode = #tpu.pipeline_mode<synchronous>, transform_indices = @transform_9, window_bounds = array<i64: 1, 128>}, {transform_indices = @transform_10, window_bounds = array<i64: 8, 128>}]} {
    %c0 = arith.constant 0 : index
    %c0_0 = arith.constant 0 : index
    %0 = vector.load %arg1[%c0, %c0_0] : memref<8x128xbf16, #tpu.memory_space<vmem>>, vector<8x128xbf16>
    %c0_1 = arith.constant 0 : index
    %c0_2 = arith.constant 0 : index
    %1 = vector.load %arg2[%c0_1, %c0_2] : memref<128x128xbf16, #tpu.memory_space<vmem>>, vector<128x128xbf16>
    %cst = arith.constant dense<0.000000e+00> : vector<8x128xf32>
    %2 = tpu.matmul %0, %1, %cst {dimension_numbers = #tpu.dot_dimension_numbers<[1], [0], [0], [1], [0, 0, 1, 1], [], []>} : vector<8x128xbf16>, vector<128x128xbf16>, vector<8x128xf32> -> vector<8x128xf32>
    %c0_3 = arith.constant 0 : index
    %c0_4 = arith.constant 0 : index
    %3 = vector.load %arg3[%c0_3, %c0_4] : memref<1x128xf32, #tpu.memory_space<vmem>>, vector<1x128xf32>
    %4 = vector.broadcast %3 : vector<1x128xf32> to vector<8x128xf32>
    %5 = arith.addf %2, %4 : vector<8x128xf32>
    %c0_5 = arith.constant 0 : index
    %c0_6 = arith.constant 0 : index
    %6 = vector.load %arg4[%c0_5, %c0_6] : memref<1x128xf32, #tpu.memory_space<vmem>>, vector<1x128xf32>
    %7 = vector.broadcast %6 : vector<1x128xf32> to vector<8x128xf32>
    %8 = arith.subf %5, %7 : vector<8x128xf32>
    %c0_7 = arith.constant 0 : index
    %c0_8 = arith.constant 0 : index
    %9 = vector.load %arg5[%c0_7, %c0_8] : memref<1x128xf32, #tpu.memory_space<vmem>>, vector<1x128xf32>
    %10 = vector.broadcast %9 : vector<1x128xf32> to vector<8x128xf32>
    %11 = arith.mulf %8, %10 : vector<8x128xf32>
    %c0_9 = arith.constant 0 : index
    %c0_10 = arith.constant 0 : index
    %12 = vector.load %arg6[%c0_9, %c0_10] : memref<1x128xf32, #tpu.memory_space<vmem>>, vector<1x128xf32>
    %13 = vector.broadcast %12 : vector<1x128xf32> to vector<8x128xf32>
    %14 = arith.mulf %11, %13 : vector<8x128xf32>
    %c0_11 = arith.constant 0 : index
    %c0_12 = arith.constant 0 : index
    %15 = vector.load %arg7[%c0_11, %c0_12] : memref<1x128xf32, #tpu.memory_space<vmem>>, vector<1x128xf32>
    %16 = vector.broadcast %15 : vector<1x128xf32> to vector<8x128xf32>
    %17 = arith.addf %14, %16 : vector<8x128xf32>
    %cst_13 = arith.constant 0.000000e+00 : f32
    %18 = vector.broadcast %cst_13 : f32 to vector<8x128xf32>
    %19 = arith.maximumf %17, %18 : vector<8x128xf32>
    %c0_14 = arith.constant 0 : index
    %c0_15 = arith.constant 0 : index
    %20 = vector.load %arg8[%c0_14, %c0_15] : memref<8x128xbf16, #tpu.memory_space<vmem>>, vector<8x128xbf16>
    %21 = arith.extf %20 : vector<8x128xbf16> to vector<8x128xf32>
    %22 = arith.mulf %19, %21 : vector<8x128xf32>
    %23 = arith.truncf %22 : vector<8x128xf32> to vector<8x128xbf16>
    %c0_16 = arith.constant 0 : index
    %c0_17 = arith.constant 0 : index
    %24 = vector.load %arg9[%c0_16, %c0_17] : memref<128x128xbf16, #tpu.memory_space<vmem>>, vector<128x128xbf16>
    %cst_18 = arith.constant dense<0.000000e+00> : vector<8x128xf32>
    %25 = tpu.matmul %23, %24, %cst_18 {dimension_numbers = #tpu.dot_dimension_numbers<[1], [0], [0], [1], [0, 0, 1, 1], [], []>} : vector<8x128xbf16>, vector<128x128xbf16>, vector<8x128xf32> -> vector<8x128xf32>
    %c0_19 = arith.constant 0 : index
    %c0_20 = arith.constant 0 : index
    %26 = vector.load %arg10[%c0_19, %c0_20] : memref<1x128xf32, #tpu.memory_space<vmem>>, vector<1x128xf32>
    %27 = vector.broadcast %26 : vector<1x128xf32> to vector<8x128xf32>
    %28 = arith.addf %25, %27 : vector<8x128xf32>
    %c0_21 = arith.constant 0 : index
    %c0_22 = arith.constant 0 : index
    %29 = vector.load %arg11[%c0_21, %c0_22] : memref<8x128xf32, #tpu.memory_space<vmem>>, vector<8x128xf32>
    tpu.vector_store %arg11[%c0_21, %c0_22], %28 {strides = array<i32>} : memref<8x128xf32, #tpu.memory_space<vmem>>, vector<8x128xf32>,
    return
  }
  func.func @transform_0(%arg0: i32) -> (i32, i32) {
    %c0_i32 = arith.constant 0 : i32
    %c0_i32_0 = arith.constant 0 : i32
    return %arg0, %c0_i32 : i32, i32
  }
  func.func @transform_1(%arg0: i32) -> (i32, i32) {
    %c0_i32 = arith.constant 0 : i32
    %c0_i32_0 = arith.constant 0 : i32
    %c0_i32_1 = arith.constant 0 : i32
    return %c0_i32, %c0_i32_0 : i32, i32
  }
  func.func @transform_2(%arg0: i32) -> (i32, i32) {
    %c0_i32 = arith.constant 0 : i32
    %c0_i32_0 = arith.constant 0 : i32
    %c0_i32_1 = arith.constant 0 : i32
    return %c0_i32, %c0_i32_0 : i32, i32
  }
  func.func @transform_3(%arg0: i32) -> (i32, i32) {
    %c0_i32 = arith.constant 0 : i32
    %c0_i32_0 = arith.constant 0 : i32
    %c0_i32_1 = arith.constant 0 : i32
    return %c0_i32, %c0_i32_0 : i32, i32
  }
  func.func @transform_4(%arg0: i32) -> (i32, i32) {
    %c0_i32 = arith.constant 0 : i32
    %c0_i32_0 = arith.constant 0 : i32
    %c0_i32_1 = arith.constant 0 : i32
    return %c0_i32, %c0_i32_0 : i32, i32
  }
  func.func @transform_5(%arg0: i32) -> (i32, i32) {
    %c0_i32 = arith.constant 0 : i32
    %c0_i32_0 = arith.constant 0 : i32
    %c0_i32_1 = arith.constant 0 : i32
    return %c0_i32, %c0_i32_0 : i32, i32
  }
  func.func @transform_6(%arg0: i32) -> (i32, i32) {
    %c0_i32 = arith.constant 0 : i32
    %c0_i32_0 = arith.constant 0 : i32
    %c0_i32_1 = arith.constant 0 : i32
    return %c0_i32, %c0_i32_0 : i32, i32
  }
  func.func @transform_7(%arg0: i32) -> (i32, i32) {
    %c0_i32 = arith.constant 0 : i32
    %c0_i32_0 = arith.constant 0 : i32
    return %arg0, %c0_i32 : i32, i32
  }
  func.func @transform_8(%arg0: i32) -> (i32, i32) {
    %c0_i32 = arith.constant 0 : i32
    %c0_i32_0 = arith.constant 0 : i32
    %c0_i32_1 = arith.constant 0 : i32
    return %c0_i32, %c0_i32_0 : i32, i32
  }
  func.func @transform_9(%arg0: i32) -> (i32, i32) {
    %c0_i32 = arith.constant 0 : i32
    %c0_i32_0 = arith.constant 0 : i32
    %c0_i32_1 = arith.constant 0 : i32
    return %c0_i32, %c0_i32_0 : i32, i32
  }
  func.func @transform_10(%arg0: i32) -> (i32, i32) {
    %c0_i32 = arith.constant 0 : i32
    %c0_i32_0 = arith.constant 0 : i32
    return %arg0, %c0_i32 : i32, i32
  }
}

</mosaic_0001>

<llo_original>
// kernel: projection_mlp.3
$region0: #{projection_mlp.3}
  #allocation0 [shape = 'u32[]', space=smem, size = 0x4, offset = 0x4, fixed_abs, tag = 'smem constant byte address 0x4 - core index']
  #allocation1 [shape = 'u32[144,128]{1,0:T(1,128)}', space=vmem, size = 0x12000, scoped, tag = 'internal scratch']
  %s0 = inlined_call_operand.vmem [shape: bf16[8,128], index: 0, kind: input, shape index: {}]
  %s1 = inlined_call_operand.vmem [shape: bf16[128,128], index: 1, kind: input, shape index: {}]
  %s2 = inlined_call_operand.vmem [shape: f32[1,128], index: 2, kind: input, shape index: {}]
  %s3 = inlined_call_operand.vmem [shape: f32[1,128], index: 3, kind: input, shape index: {}]
  %s4 = inlined_call_operand.vmem [shape: f32[1,128], index: 4, kind: input, shape index: {}]
  %s5 = inlined_call_operand.vmem [shape: f32[1,128], index: 5, kind: input, shape index: {}]
  %s6 = inlined_call_operand.vmem [shape: f32[1,128], index: 6, kind: input, shape index: {}]
  %s7 = inlined_call_operand.vmem [shape: bf16[8,128], index: 7, kind: input, shape index: {}]
  %s8 = inlined_call_operand.vmem [shape: bf16[128,128], index: 8, kind: input, shape index: {}]
  %s9 = inlined_call_operand.vmem [shape: f32[1,128], index: 9, kind: input, shape index: {}]
  %s10 = inlined_call_operand.hbm [shape: f32[8,128], index: 10, kind: output, shape index: {}]
  %s11 = sld [smem:[#allocation0]]
  $region50: #{projection_mlp.3} parent=0
    _
  %s13 = ssub.s32 1, %s11
  %s14 = scalar_select 0, %s13, %s11
  $region1: #{projection_mlp.3} parent=0
    #allocation2 [shape = 'u8[4096]{0}', space=vmem, size = 0x1000, scoped, tag = 'output window, operand 0, single buffered']
    #allocation3 [shape = 's32[1]{0}', space=sflag, size = 0x4, scoped, tag = 'scoped memory for projection_mlp.3']
    %15 = vsyncpa [#allocation3], 0
    // Predicated region
    $region2: #{projection_mlp.3} parent=1 // pred_check
      _
    $region3: #{projection_mlp.3} parent=1 // pred_check_branch
      %17 = sbr.rel (0) target = $region5
    $region4: #{projection_mlp.3} parent=1 // pred_region
      _
    $region5: #{projection_mlp.3} parent=1 // pred_fallthru
      _
    // Predicated region
    $region6: #{projection_mlp.3} parent=1 // pred_check
      _
    $region7: #{projection_mlp.3} parent=1 // pred_check_branch
      %19 = sbr.rel (0) target = $region9
    $region8: #{projection_mlp.3} parent=1 // pred_region
      _
    $region9: #{projection_mlp.3} parent=1 // pred_fallthru
      _
    // Predicated region
    $region10: #{projection_mlp.3} parent=1 // pred_check
      _
    $region11: #{projection_mlp.3} parent=1 // pred_check_branch
      %21 = sbr.rel (0) target = $region13
    $region12: #{projection_mlp.3} parent=1 // pred_region
      _
    $region13: #{projection_mlp.3} parent=1 // pred_fallthru
      _
    // Predicated region
    $region14: #{projection_mlp.3} parent=1 // pred_check
      _
    $region15: #{projection_mlp.3} parent=1 // pred_check_branch
      %23 = sbr.rel (0) target = $region17
    $region16: #{projection_mlp.3} parent=1 // pred_region
      _
    $region17: #{projection_mlp.3} parent=1 // pred_fallthru
      _
    // Predicated region
    $region18: #{projection_mlp.3} parent=1 // pred_check
      _
    $region19: #{projection_mlp.3} parent=1 // pred_check_branch
      %25 = sbr.rel (0) target = $region21
    $region20: #{projection_mlp.3} parent=1 // pred_region
      _
    $region21: #{projection_mlp.3} parent=1 // pred_fallthru
      _
    // Predicated region
    $region22: #{projection_mlp.3} parent=1 // pred_check
      _
    $region23: #{projection_mlp.3} parent=1 // pred_check_branch
      %27 = sbr.rel (0) target = $region25
    $region24: #{projection_mlp.3} parent=1 // pred_region
      _
    $region25: #{projection_mlp.3} parent=1 // pred_fallthru
      _
    // Predicated region
    $region26: #{projection_mlp.3} parent=1 // pred_check
      _
    $region27: #{projection_mlp.3} parent=1 // pred_check_branch
      %29 = sbr.rel (0) target = $region29
    $region28: #{projection_mlp.3} parent=1 // pred_region
      _
    $region29: #{projection_mlp.3} parent=1 // pred_fallthru
      _
    // Predicated region
    $region30: #{projection_mlp.3} parent=1 // pred_check
      _
    $region31: #{projection_mlp.3} parent=1 // pred_check_branch
      %31 = sbr.rel (0) target = $region33
    $region32: #{projection_mlp.3} parent=1 // pred_region
      _
    $region33: #{projection_mlp.3} parent=1 // pred_fallthru
      _
    // Predicated region
    $region34: #{projection_mlp.3} parent=1 // pred_check
      _
    $region35: #{projection_mlp.3} parent=1 // pred_check_branch
      %33 = sbr.rel (0) target = $region37
    $region36: #{projection_mlp.3} parent=1 // pred_region
      _
    $region37: #{projection_mlp.3} parent=1 // pred_fallthru
      _
    // Predicated region
    $region38: #{projection_mlp.3} parent=1 // pred_check
      _
    $region39: #{projection_mlp.3} parent=1 // pred_check_branch
      %35 = sbr.rel (0) target = $region41
    $region40: #{projection_mlp.3} parent=1 // pred_region
      _
    $region41: #{projection_mlp.3} parent=1 // pred_fallthru
      _
    %v37 = vld [vmem:[%s0] sm:$0xf]
    %v38 = vld [vmem:[%s1] sm:$0xf]
    %v39 = vld [vmem:[%s1 + $0x4] sm:$0xf]
    %v40 = vld [vmem:[%s1 + $0x8] sm:$0xf]
    %v41 = vld [vmem:[%s1 + $0xc] sm:$0xf]
    %v42 = vld [vmem:[%s1 + $0x10] sm:$0xf]
    %v43 = vld [vmem:[%s1 + $0x14] sm:$0xf]
    %v44 = vld [vmem:[%s1 + $0x18] sm:$0xf]
    %v45 = vld [vmem:[%s1 + $0x1c] sm:$0xf]
    %v46 = vld [vmem:[%s1 + $0x20] sm:$0xf]
    %v47 = vld [vmem:[%s1 + $0x24] sm:$0xf]
    %v48 = vld [vmem:[%s1 + $0x28] sm:$0xf]
    %v49 = vld [vmem:[%s1 + $0x2c] sm:$0xf]
    %v50 = vld [vmem:[%s1 + $0x30] sm:$0xf]
    %v51 = vld [vmem:[%s1 + $0x34] sm:$0xf]
    %v52 = vld [vmem:[%s1 + $0x38] sm:$0xf]
    %v53 = vld [vmem:[%s1 + $0x3c] sm:$0xf]
    %v54 = vld [vmem:[%s2] sm:$0x1]
    %v56 = vlaneseq
    %v57 = vshrl.u32 %v56, 7
    %v58 = vsub.s32 0, %v57
    %v59 = vrot.slane %v54, %v58
    %v77 = vunpack.c.l.b16 %v38
    %v78 = vunpack.c.l.b16 %v39
    %v79 = vunpack.c.l.b16 %v40
    %v80 = vunpack.c.l.b16 %v41
    %v81 = vunpack.c.l.b16 %v42
    %v82 = vunpack.c.l.b16 %v43
    %v83 = vunpack.c.l.b16 %v44
    %v84 = vunpack.c.l.b16 %v45
    %v85 = vunpack.c.l.b16 %v46
    %v86 = vunpack.c.l.b16 %v47
    %v87 = vunpack.c.l.b16 %v48
    %v88 = vunpack.c.l.b16 %v49
    %v89 = vunpack.c.l.b16 %v50
    %v90 = vunpack.c.l.b16 %v51
    %v91 = vunpack.c.l.b16 %v52
    %v92 = vunpack.c.l.b16 %v53
    %v93 = vpack.c.b16 %v78, %v77
    %v94 = vpack.c.b16 %v80, %v79
    %v95 = vpack.c.b16 %v82, %v81
    %v96 = vpack.c.b16 %v84, %v83
    %v97 = vpack.c.b16 %v86, %v85
    %v98 = vpack.c.b16 %v88, %v87
    %v99 = vpack.c.b16 %v90, %v89
    %v100 = vpack.c.b16 %v92, %v91
    %109 = vmatprep.subr.bf16.mxu0 0
    %110 = vmatpush1.bf16.msra.mxu0 %v100
    %111 = vmatprep.subr.bf16.mxu0 0
    %112 = vmatpush1.bf16.msra.mxu0 %v99
    %113 = vmatprep.subr.bf16.mxu0 0
    %114 = vmatpush1.bf16.msra.mxu0 %v98
    %115 = vmatprep.subr.bf16.mxu0 0
    %116 = vmatpush1.bf16.msra.mxu0 %v97
    %117 = vmatprep.subr.bf16.mxu0 0
    %118 = vmatpush1.bf16.msra.mxu0 %v96
    %119 = vmatprep.subr.bf16.mxu0 0
    %120 = vmatpush1.bf16.msra.mxu0 %v95
    %121 = vmatprep.subr.bf16.mxu0 0
    %122 = vmatpush1.bf16.msra.mxu0 %v94
    %123 = vmatprep.subr.bf16.mxu0 0
    %124 = vmatpush1.bf16.msra.mxu0 %v93
    %125 = vmatprep.subr.bf16.mxu0 0
    %126 = vmatpush2.bf16.msra.mxu0 0
    %127 = vmatprep.subr.bf16.mxu0 0
    %128 = vmatpush2.bf16.msra.mxu0 0
    %129 = vmatprep.subr.bf16.mxu0 0
    %130 = vmatpush2.bf16.msra.mxu0 0
    %131 = vmatprep.subr.bf16.mxu0 0
    %132 = vmatpush2.bf16.msra.mxu0 0
    %133 = vmatprep.subr.bf16.mxu0 0
    %134 = vmatpush2.bf16.msra.mxu0 0
    %135 = vmatprep.subr.bf16.mxu0 0
    %136 = vmatpush2.bf16.msra.mxu0 0
    %137 = vmatprep.subr.bf16.mxu0 0
    %138 = vmatpush2.bf16.msra.mxu0 0
    %139 = vmatprep.subr.bf16.mxu0 0
    %140 = vmatpush2.bf16.msra.mxu0 0
    %141 = vmatprep.mubr.bf16.mxu0 0
    %142 = vmatmul.mubr.bf16.gmra.mxu0 %v37
    %v143 = vpop.f32.mrf.mxu0
    %v144 = vadd.f32 %v59, %v143
    %v145 = vpop.f32.mrf.mxu0
    %v146 = vpop.f32.mrf.mxu0
    %v147 = vpop.f32.mrf.mxu0
    %148 = vdwg.mxu0
    %v149 = vld [vmem:[%s3] sm:$0x1]
    %v151 = vlaneseq
    %v152 = vshrl.u32 %v151, 7
    %v153 = vsub.s32 0, %v152
    %v154 = vrot.slane %v149, %v153
    %v156 = vsub.f32 %v144, %v154
    %v157 = vld [vmem:[%s4] sm:$0x1]
    %v159 = vlaneseq
    %v160 = vshrl.u32 %v159, 7
    %v161 = vsub.s32 0, %v160
    %v162 = vrot.slane %v157, %v161
    %v164 = vmul.f32 %v156, %v162
    %v165 = vld [vmem:[%s5] sm:$0x1]
    %v167 = vlaneseq
    %v168 = vshrl.u32 %v167, 7
    %v169 = vsub.s32 0, %v168
    %v170 = vrot.slane %v165, %v169
    %v172 = vmul.f32 %v164, %v170
    %v173 = vld [vmem:[%s6] sm:$0x1]
    %v175 = vlaneseq
    %v176 = vshrl.u32 %v175, 7
    %v177 = vsub.s32 0, %v176
    %v178 = vrot.slane %v173, %v177
    %v180 = vadd.f32 %v172, %v178
    %v181 = vmax.f32 %v180, 0.0
    %v182 = vld [vmem:[%s7] sm:$0xf]
    %v183 = vunpack.c.l.bf16 %v182
    %v184 = vmul.f32 %v181, %v183
    %v185 = vpack.c.bf16 %v184, %v184
    %v186 = vld [vmem:[%s8] sm:$0xf]
    %v187 = vld [vmem:[%s8 + $0x4] sm:$0xf]
    %v188 = vld [vmem:[%s8 + $0x8] sm:$0xf]
    %v189 = vld [vmem:[%s8 + $0xc] sm:$0xf]
    %v190 = vld [vmem:[%s8 + $0x10] sm:$0xf]
    %v191 = vld [vmem:[%s8 + $0x14] sm:$0xf]
    %v192 = vld [vmem:[%s8 + $0x18] sm:$0xf]
    %v193 = vld [vmem:[%s8 + $0x1c] sm:$0xf]
    %v194 = vld [vmem:[%s8 + $0x20] sm:$0xf]
    %v195 = vld [vmem:[%s8 + $0x24] sm:$0xf]
    %v196 = vld [vmem:[%s8 + $0x28] sm:$0xf]
    %v197 = vld [vmem:[%s8 + $0x2c] sm:$0xf]
    %v198 = vld [vmem:[%s8 + $0x30] sm:$0xf]
    %v199 = vld [vmem:[%s8 + $0x34] sm:$0xf]
    %v200 = vld [vmem:[%s8 + $0x38] sm:$0xf]
    %v201 = vld [vmem:[%s8 + $0x3c] sm:$0xf]
    %v202 = vld [vmem:[%s9] sm:$0x1]
    %v204 = vlaneseq
    %v205 = vshrl.u32 %v204, 7
    %v206 = vsub.s32 0, %v205
    %v207 = vrot.slane %v202, %v206
    %v225 = vunpack.c.l.b16 %v186
    %v226 = vunpack.c.l.b16 %v187
    %v227 = vunpack.c.l.b16 %v188
    %v228 = vunpack.c.l.b16 %v189
    %v229 = vunpack.c.l.b16 %v190
    %v230 = vunpack.c.l.b16 %v191
    %v231 = vunpack.c.l.b16 %v192
    %v232 = vunpack.c.l.b16 %v193
    %v233 = vunpack.c.l.b16 %v194
    %v234 = vunpack.c.l.b16 %v195
    %v235 = vunpack.c.l.b16 %v196
    %v236 = vunpack.c.l.b16 %v197
    %v237 = vunpack.c.l.b16 %v198
    %v238 = vunpack.c.l.b16 %v199
    %v239 = vunpack.c.l.b16 %v200
    %v240 = vunpack.c.l.b16 %v201
    %v241 = vpack.c.b16 %v226, %v225
    %v242 = vpack.c.b16 %v228, %v227
    %v243 = vpack.c.b16 %v230, %v229
    %v244 = vpack.c.b16 %v232, %v231
    %v245 = vpack.c.b16 %v234, %v233
    %v246 = vpack.c.b16 %v236, %v235
    %v247 = vpack.c.b16 %v238, %v237
    %v248 = vpack.c.b16 %v240, %v239
    %257 = vmatprep.subr.bf16.mxu0 0
    %258 = vmatpush1.bf16.msra.mxu0 %v248
    %259 = vmatprep.subr.bf16.mxu0 0
    %260 = vmatpush1.bf16.msra.mxu0 %v247
    %261 = vmatprep.subr.bf16.mxu0 0
    %262 = vmatpush1.bf16.msra.mxu0 %v246
    %263 = vmatprep.subr.bf16.mxu0 0
    %264 = vmatpush1.bf16.msra.mxu0 %v245
    %265 = vmatprep.subr.bf16.mxu0 0
    %266 = vmatpush1.bf16.msra.mxu0 %v244
    %267 = vmatprep.subr.bf16.mxu0 0
    %268 = vmatpush1.bf16.msra.mxu0 %v243
    %269 = vmatprep.subr.bf16.mxu0 0
    %270 = vmatpush1.bf16.msra.mxu0 %v242
    %271 = vmatprep.subr.bf16.mxu0 0
    %272 = vmatpush1.bf16.msra.mxu0 %v241
    %273 = vmatprep.subr.bf16.mxu0 0
    %274 = vmatpush2.bf16.msra.mxu0 0
    %275 = vmatprep.subr.bf16.mxu0 0
    %276 = vmatpush2.bf16.msra.mxu0 0
    %277 = vmatprep.subr.bf16.mxu0 0
    %278 = vmatpush2.bf16.msra.mxu0 0
    %279 = vmatprep.subr.bf16.mxu0 0
    %280 = vmatpush2.bf16.msra.mxu0 0
    %281 = vmatprep.subr.bf16.mxu0 0
    %282 = vmatpush2.bf16.msra.mxu0 0
    %283 = vmatprep.subr.bf16.mxu0 0
    %284 = vmatpush2.bf16.msra.mxu0 0
    %285 = vmatprep.subr.bf16.mxu0 0
    %286 = vmatpush2.bf16.msra.mxu0 0
    %287 = vmatprep.subr.bf16.mxu0 0
    %288 = vmatpush2.bf16.msra.mxu0 0
    %289 = vmatprep.mubr.bf16.mxu0 0
    %290 = vmatmul.mubr.bf16.gmra.mxu0 %v185
    %v291 = vpop.f32.mrf.mxu0
    %v292 = vadd.f32 %v207, %v291
    %v293 = vpop.f32.mrf.mxu0
    %v294 = vpop.f32.mrf.mxu0
    %v295 = vpop.f32.mrf.mxu0
    %296 = vdwg.mxu0
    %297 = vst [vmem:[#allocation2] sm:$0xff] %v292
    // Predicated region
    $region42: #{projection_mlp.3} parent=1 // pred_check
      _
    $region43: #{projection_mlp.3} parent=1 // pred_check_branch
      %299 = sbr.rel (0) target = $region45
    $region44: #{projection_mlp.3} parent=1 // pred_region
      %s301 = ssub.s32 128, 128
      %302 = vsyncadd [#allocation3], %s301
      %s304 = sshll.u32 [#allocation2], 4
      %s305 = int_to_ptr.vmem [resolvable:$true] %s304
      %307 = dma.vmem_to_hbm [thread:$0]  %s305, 128, %s10, [#allocation3]
    $region45: #{projection_mlp.3} parent=1 // pred_fallthru
      _
    // Predicated region
    $region46: #{projection_mlp.3} parent=1 // pred_check
      _
    $region47: #{projection_mlp.3} parent=1 // pred_check_branch
      %309 = sbr.rel (0) target = $region49
    $region48: #{projection_mlp.3} parent=1 // pred_region
      %310 = dma.done [#allocation3], 128
    $region49: #{projection_mlp.3} parent=1 // pred_fallthru
      _
    %311 = vsyncpa [#allocation3], 1

// kernel: projection_mlp.2
$region0: #{projection_mlp.2}
  #allocation0 [shape = 'u32[]', space=smem, size = 0x4, offset = 0x4, fixed_abs, tag = 'smem constant byte address 0x4 - core index']
  #allocation1 [shape = 'u32[144,128]{1,0:T(1,128)}', space=vmem, size = 0x12000, scoped, tag = 'internal scratch']
  %s0 = inlined_call_operand.vmem [shape: bf16[8,128], index: 0, kind: input, shape index: {}]
  %s1 = inlined_call_operand.vmem [shape: bf16[128,128], index: 1, kind: input, shape index: {}]
  %s2 = inlined_call_operand.vmem [shape: f32[1,128], index: 2, kind: input, shape index: {}]
  %s3 = inlined_call_operand.vmem [shape: f32[1,128], index: 3, kind: output, shape index: {0}]
  %s4 = inlined_call_operand.vmem [shape: f32[1,128], index: 4, kind: output, shape index: {1}]
  %5 = xla_tuple %s3, %s4
  %s6 = sld [smem:[#allocation0]]
  $region34: #{projection_mlp.2} parent=0
    _
  %s8 = ssub.s32 1, %s6
  %s9 = scalar_select 0, %s8, %s6
  // Predicated region
  $region2: #{projection_mlp.2} parent=0 // pred_check
    _
  $region3: #{projection_mlp.2} parent=0 // pred_check_branch
    %11 = sbr.rel (0) target = $region5
  $region4: #{projection_mlp.2} parent=0 // pred_region
    _
  $region5: #{projection_mlp.2} parent=0 // pred_fallthru
    _
  // Predicated region
  $region6: #{projection_mlp.2} parent=0 // pred_check
    _
  $region7: #{projection_mlp.2} parent=0 // pred_check_branch
    %13 = sbr.rel (0) target = $region9
  $region8: #{projection_mlp.2} parent=0 // pred_region
    _
  $region9: #{projection_mlp.2} parent=0 // pred_fallthru
    _
  // Predicated region
  $region10: #{projection_mlp.2} parent=0 // pred_check
    _
  $region11: #{projection_mlp.2} parent=0 // pred_check_branch
    %15 = sbr.rel (0) target = $region13
  $region12: #{projection_mlp.2} parent=0 // pred_region
    _
  $region13: #{projection_mlp.2} parent=0 // pred_fallthru
    _
  %p17 = scmp.eq.s32.totalorder 0, 0
  // Predicated region
  $region14: #{projection_mlp.2} parent=0 // pred_check
    %p18 = pneg %p17
  $region15: #{projection_mlp.2} parent=0 // pred_check_branch
    %20 = sbr.rel (%p18) target = $region17
  $region16: #{projection_mlp.2} parent=0 // pred_region
    %21 = vst [vmem:[%s3] sm:$0x1] 0.0
    %22 = vst [vmem:[%s4] sm:$0x1] 0.0
  $region17: #{projection_mlp.2} parent=0 // pred_fallthru
    _
  %v23 = vld [vmem:[%s0] sm:$0xf]
  %v24 = vld [vmem:[%s1] sm:$0xf]
  %v25 = vld [vmem:[%s1 + $0x4] sm:$0xf]
  %v26 = vld [vmem:[%s1 + $0x8] sm:$0xf]
  %v27 = vld [vmem:[%s1 + $0xc] sm:$0xf]
  %v28 = vld [vmem:[%s1 + $0x10] sm:$0xf]
  %v29 = vld [vmem:[%s1 + $0x14] sm:$0xf]
  %v30 = vld [vmem:[%s1 + $0x18] sm:$0xf]
  %v31 = vld [vmem:[%s1 + $0x1c] sm:$0xf]
  %v32 = vld [vmem:[%s1 + $0x20] sm:$0xf]
  %v33 = vld [vmem:[%s1 + $0x24] sm:$0xf]
  %v34 = vld [vmem:[%s1 + $0x28] sm:$0xf]
  %v35 = vld [vmem:[%s1 + $0x2c] sm:$0xf]
  %v36 = vld [vmem:[%s1 + $0x30] sm:$0xf]
  %v37 = vld [vmem:[%s1 + $0x34] sm:$0xf]
  %v38 = vld [vmem:[%s1 + $0x38] sm:$0xf]
  %v39 = vld [vmem:[%s1 + $0x3c] sm:$0xf]
  %v40 = vld [vmem:[%s2] sm:$0x1]
  %v42 = vlaneseq
  %v43 = vshrl.u32 %v42, 7
  %v44 = vsub.s32 0, %v43
  %v45 = vrot.slane %v40, %v44
  %v63 = vunpack.c.l.b16 %v24
  %v64 = vunpack.c.l.b16 %v25
  %v65 = vunpack.c.l.b16 %v26
  %v66 = vunpack.c.l.b16 %v27
  %v67 = vunpack.c.l.b16 %v28
  %v68 = vunpack.c.l.b16 %v29
  %v69 = vunpack.c.l.b16 %v30
  %v70 = vunpack.c.l.b16 %v31
  %v71 = vunpack.c.l.b16 %v32
  %v72 = vunpack.c.l.b16 %v33
  %v73 = vunpack.c.l.b16 %v34
  %v74 = vunpack.c.l.b16 %v35
  %v75 = vunpack.c.l.b16 %v36
  %v76 = vunpack.c.l.b16 %v37
  %v77 = vunpack.c.l.b16 %v38
  %v78 = vunpack.c.l.b16 %v39
  %v79 = vpack.c.b16 %v64, %v63
  %v80 = vpack.c.b16 %v66, %v65
  %v81 = vpack.c.b16 %v68, %v67
  %v82 = vpack.c.b16 %v70, %v69
  %v83 = vpack.c.b16 %v72, %v71
  %v84 = vpack.c.b16 %v74, %v73
  %v85 = vpack.c.b16 %v76, %v75
  %v86 = vpack.c.b16 %v78, %v77
  %95 = vmatprep.subr.bf16.mxu0 0
  %96 = vmatpush1.bf16.msra.mxu0 %v86
  %97 = vmatprep.subr.bf16.mxu0 0
  %98 = vmatpush1.bf16.msra.mxu0 %v85
  %99 = vmatprep.subr.bf16.mxu0 0
  %100 = vmatpush1.bf16.msra.mxu0 %v84
  %101 = vmatprep.subr.bf16.mxu0 0
  %102 = vmatpush1.bf16.msra.mxu0 %v83
  %103 = vmatprep.subr.bf16.mxu0 0
  %104 = vmatpush1.bf16.msra.mxu0 %v82
  %105 = vmatprep.subr.bf16.mxu0 0
  %106 = vmatpush1.bf16.msra.mxu0 %v81
  %107 = vmatprep.subr.bf16.mxu0 0
  %108 = vmatpush1.bf16.msra.mxu0 %v80
  %109 = vmatprep.subr.bf16.mxu0 0
  %110 = vmatpush1.bf16.msra.mxu0 %v79
  %111 = vmatprep.subr.bf16.mxu0 0
  %112 = vmatpush2.bf16.msra.mxu0 0
  %113 = vmatprep.subr.bf16.mxu0 0
  %114 = vmatpush2.bf16.msra.mxu0 0
  %115 = vmatprep.subr.bf16.mxu0 0
  %116 = vmatpush2.bf16.msra.mxu0 0
  %117 = vmatprep.subr.bf16.mxu0 0
  %118 = vmatpush2.bf16.msra.mxu0 0
  %119 = vmatprep.subr.bf16.mxu0 0
  %120 = vmatpush2.bf16.msra.mxu0 0
  %121 = vmatprep.subr.bf16.mxu0 0
  %122 = vmatpush2.bf16.msra.mxu0 0
  %123 = vmatprep.subr.bf16.mxu0 0
  %124 = vmatpush2.bf16.msra.mxu0 0
  %125 = vmatprep.subr.bf16.mxu0 0
  %126 = vmatpush2.bf16.msra.mxu0 0
  %127 = vmatprep.mubr.bf16.mxu0 0
  %128 = vmatmul.mubr.bf16.gmra.mxu0 %v23
  %v129 = vpop.f32.mrf.mxu0
  %v130 = vadd.f32 %v45, %v129
  %v131 = vpop.f32.mrf.mxu0
  %v132 = vpop.f32.mrf.mxu0
  %v133 = vpop.f32.mrf.mxu0
  %134 = vdwg.mxu0
  %v135 = vld [vmem:[%s3] sm:$0x1]
  %v136 = vrot.slane %v130, 4
  %v137 = vadd.f32 %v130, %v136
  %v138 = vrot.slane %v137, 2
  %v139 = vadd.f32 %v137, %v138
  %v140 = vrot.slane %v139, 1
  %v141 = vadd.f32 %v139, %v140
  %v142 = vadd.f32 %v135, %v141
  %143 = vst [vmem:[%s3] sm:$0x1] %v142
  %v144 = vld [vmem:[%s4] sm:$0x1]
  %v145 = vmul.f32 %v130, %v130
  %v146 = vrot.slane %v145, 4
  %v147 = vadd.f32 %v145, %v146
  %v148 = vrot.slane %v147, 2
  %v149 = vadd.f32 %v147, %v148
  %v150 = vrot.slane %v149, 1
  %v151 = vadd.f32 %v149, %v150
  %v152 = vadd.f32 %v144, %v151
  %153 = vst [vmem:[%s4] sm:$0x1] %v152
  // Predicated region
  $region18: #{projection_mlp.2} parent=0 // pred_check
    _
  $region19: #{projection_mlp.2} parent=0 // pred_check_branch
    %155 = sbr.rel (0) target = $region21
  $region20: #{projection_mlp.2} parent=0 // pred_region
    _
  $region21: #{projection_mlp.2} parent=0 // pred_fallthru
    _
  // Predicated region
  $region22: #{projection_mlp.2} parent=0 // pred_check
    _
  $region23: #{projection_mlp.2} parent=0 // pred_check_branch
    %157 = sbr.rel (0) target = $region25
  $region24: #{projection_mlp.2} parent=0 // pred_region
    _
  $region25: #{projection_mlp.2} parent=0 // pred_fallthru
    _
  // Predicated region
  $region26: #{projection_mlp.2} parent=0 // pred_check
    _
  $region27: #{projection_mlp.2} parent=0 // pred_check_branch
    %159 = sbr.rel (0) target = $region29
  $region28: #{projection_mlp.2} parent=0 // pred_region
    _
  $region29: #{projection_mlp.2} parent=0 // pred_fallthru
    _
  // Predicated region
  $region30: #{projection_mlp.2} parent=0 // pred_check
    _
  $region31: #{projection_mlp.2} parent=0 // pred_check_branch
    %161 = sbr.rel (0) target = $region33
  $region32: #{projection_mlp.2} parent=0 // pred_region
    _
  $region33: #{projection_mlp.2} parent=0 // pred_fallthru
    _

</llo_original>
